<compile_context>
chip_gen: v7x
topology: tpu7x:2x2x1
jax: 0.10.0
libtpu: 0.0.40
codegen_flags: <defaults>
</compile_context>

<pallas_src>
import math

import jax
import jax.numpy as jnp
from jax.experimental import pallas as pl
from jax.experimental.pallas import tpu as pltpu


_LANE = 128
_NEG_BIG = -1e30  # bias fill for padded class columns: exp() underflows to 0


def _round_up(x, m):
    return ((x + m - 1) // m) * m


def _sgc_kernel(x_ref, w_ref, b_ref, o_ref):
    # x_ref: (TM, Fp) bf16   w_ref: (Fp, Cp) bf16   b_ref: (1, Cp) f32
    # o_ref: (TM, Cp) f32
    logits = jnp.dot(x_ref[...], w_ref[...], preferred_element_type=jnp.float32)
    logits = logits + b_ref[...]                      # broadcast bias over rows
    # numerically-stable log_softmax along the (padded) class axis.
    # Padded columns have bias -1e30 -> contribute exactly 0 to the sum.
    m = jnp.max(logits, axis=-1, keepdims=True)
    shifted = logits - m
    lse = jnp.log(jnp.sum(jnp.exp(shifted), axis=-1, keepdims=True))
    o_ref[...] = (shifted - lse).astype(o_ref.dtype)


def _vmem_bytes(tm, fp, cp, in_bytes):
    # double-buffered x tile + f32 out tile, (conservatively) double-buffered W
    return (2 * tm * fp * in_bytes        # x tiles
            + 2 * tm * cp * 4             # f32 out tiles
            + 2 * fp * cp * in_bytes      # weight
            + 2 * cp * 4)                 # bias


def sgc_forward(x, weight, bias, *, tm=512, compute_dtype=jnp.bfloat16,
                vmem_budget_bytes=40 * 1024 * 1024):
    """SGC forward: log_softmax(x @ weight + bias, axis=1)."""
    n, f = x.shape
    f2, c = weight.shape
    assert f == f2
    in_bytes = jnp.dtype(compute_dtype).itemsize

    # ---- TPU-friendly padded shapes ------------------------------------
    fp = _round_up(f, _LANE)   # MXU contraction dim / lane-dense x tile
    cp = _round_up(c, _LANE)   # lane-dense output (unmasked vst)

    # Row tile: multiple of 128; shrink to fit the VMEM budget (v7x = 64 MiB
    # physical), then shrink further so the grid keeps >= 2 steps when possible
    # (v7x has 2 TensorCores sharded over the "parallel" axis).
    tm = max(_LANE, _round_up(int(tm), _LANE))
    while tm > _LANE and _vmem_bytes(tm, fp, cp, in_bytes) > vmem_budget_bytes:
        tm //= 2
    while tm > _LANE and pl.cdiv(n, tm) < 2:
        tm //= 2

    n_pad = _round_up(n, tm)
    grid = (n_pad // tm,)

    # Zero-pad x / W; padded class columns get a huge negative bias so they
    # never influence the softmax reduction. Padded rows are sliced off below.
    x_p = jnp.zeros((n_pad, fp), compute_dtype).at[:n, :f].set(
        x.astype(compute_dtype))
    w_p = jnp.zeros((fp, cp), compute_dtype).at[:f, :c].set(
        weight.astype(compute_dtype))
    b_p = jnp.full((1, cp), _NEG_BIG, jnp.float32).at[0, :c].set(
        bias.astype(jnp.float32))

    needed = _vmem_bytes(tm, fp, cp, in_bytes)
    vmem_limit = int(min(max(needed + (8 << 20), 32 << 20), 60 << 20))

    cost = pl.CostEstimate(
        flops=2 * n_pad * fp * cp,
        transcendentals=n_pad * cp,
        bytes_accessed=(n_pad * fp * in_bytes + fp * cp * in_bytes
                        + cp * 4 + n_pad * cp * 4),
    )

    out = pl.pallas_call(
        _sgc_kernel,
        out_shape=jax.ShapeDtypeStruct((n_pad, cp), jnp.float32),
        grid_spec=pltpu.PrefetchScalarGridSpec(
            num_scalar_prefetch=0,
            grid=grid,
            in_specs=[
                pl.BlockSpec((tm, fp), lambda i: (i, 0)),   # row tile of x
                pl.BlockSpec((fp, cp), lambda i: (0, 0)),   # full weight, resident
                pl.BlockSpec((1, cp), lambda i: (0, 0)),    # bias row
            ],
            out_specs=pl.BlockSpec((tm, cp), lambda i: (i, 0)),
        ),
        compiler_params=pltpu.CompilerParams(
            dimension_semantics=("parallel",),
            vmem_limit_bytes=vmem_limit,
        ),
        cost_estimate=cost,
    )(x_p, w_p, b_p)

    # drop padded rows / classes
    return out[:n, :c]


def init_mylinear_params(key, in_features, out_features):
    """Deterministic replica of MyLinear.reset_parameters():
    uniform(-stdv, stdv) with stdv = 1/sqrt(in_features)."""
    stdv = 1.0 / math.sqrt(in_features)
    kw, kb = jax.random.split(key)
    weight = jax.random.uniform(
        kw, (in_features, out_features), jnp.float32, minval=-stdv, maxval=stdv
    )
    bias = jax.random.uniform(
        kb, (out_features,), jnp.float32, minval=-stdv, maxval=stdv
    )
    return weight, bias


if __name__ == "__main__":
    # Small shapes consistent with SGC(nfeat, nhid, nclass, ntrans=1):
    # only one MyLinear(nfeat, nclass) layer is used in forward().
    N_NODES = 8     # number of nodes / rows
    NFEAT = 32      # input feature dim
    NCLASS = 16     # number of classes

    key = jax.random.PRNGKey(0)
    kx, kp = jax.random.split(key)

    x = jax.random.normal(kx, (N_NODES, NFEAT), jnp.float32)
    weight, bias = init_mylinear_params(kp, NFEAT, NCLASS)

    out = sgc_forward(x, weight, bias)
    out = jax.block_until_ready(out)

    # sanity check against a pure-JAX reference on the same bf16-cast operands
    xb = x.astype(jnp.bfloat16).astype(jnp.float32)
    wb = weight.astype(jnp.bfloat16).astype(jnp.float32)
    logits_ref = jnp.dot(xb, wb, precision=jax.lax.Precision.HIGHEST) + bias
    ref = jax.nn.log_softmax(logits_ref, axis=1)

    assert out.shape == (N_NODES, NCLASS)
    assert jnp.allclose(out, ref, atol=2e-4, rtol=2e-4)

    print("KERNEL_OK")
</pallas_src>

<mosaic_0001>
module attributes {stable_mosaic.version = 11 : i64} {
  func.func @_sgc_kernel(%arg0: i32, %arg1: memref<128x128xbf16, #tpu.memory_space<vmem>>, %arg2: memref<128x128xbf16, #tpu.memory_space<vmem>>, %arg3: memref<1x128xf32, #tpu.memory_space<vmem>>, %arg4: memref<128x128xf32, #tpu.memory_space<vmem>>) attributes {dimension_semantics = [#tpu.dimension_semantics<parallel>], iteration_bounds = array<i64: 1>, scalar_prefetch = 0 : i64, scratch_operands = 0 : i64, tpu.core_type = #tpu.core_type<tc>, window_params = [{transform_indices = @transform_0, window_bounds = array<i64: 128, 128>}, {pipeline_mode = #tpu.pipeline_mode<synchronous>, transform_indices = @transform_1, window_bounds = array<i64: 128, 128>}, {pipeline_mode = #tpu.pipeline_mode<synchronous>, transform_indices = @transform_2, window_bounds = array<i64: 1, 128>}, {transform_indices = @transform_3, window_bounds = array<i64: 128, 128>}]} {
    %c0 = arith.constant 0 : index
    %c0_0 = arith.constant 0 : index
    %0 = vector.load %arg1[%c0, %c0_0] : memref<128x128xbf16, #tpu.memory_space<vmem>>, vector<128x128xbf16>
    %c0_1 = arith.constant 0 : index
    %c0_2 = arith.constant 0 : index
    %1 = vector.load %arg2[%c0_1, %c0_2] : memref<128x128xbf16, #tpu.memory_space<vmem>>, vector<128x128xbf16>
    %cst = arith.constant dense<0.000000e+00> : vector<128x128xf32>
    %2 = tpu.matmul %0, %1, %cst {dimension_numbers = #tpu.dot_dimension_numbers<[1], [0], [0], [1], [0, 0, 1, 1], [], []>} : vector<128x128xbf16>, vector<128x128xbf16>, vector<128x128xf32> -> vector<128x128xf32>
    %c0_3 = arith.constant 0 : index
    %c0_4 = arith.constant 0 : index
    %3 = vector.load %arg3[%c0_3, %c0_4] : memref<1x128xf32, #tpu.memory_space<vmem>>, vector<1x128xf32>
    %4 = vector.broadcast %3 : vector<1x128xf32> to vector<128x128xf32>
    %5 = arith.addf %2, %4 : vector<128x128xf32>
    %cst_5 = arith.constant dense<0xFF800000> : vector<128xf32>
    %6 = vector.multi_reduction <maximumf>, %5, %cst_5 [1] : vector<128x128xf32> to vector<128xf32>
    %7 = vector.shape_cast %6 : vector<128xf32> to vector<128x1xf32>
    %8 = vector.broadcast %7 : vector<128x1xf32> to vector<128x128xf32>
    %9 = arith.subf %5, %8 : vector<128x128xf32>
    %10 = math.exp %9 : vector<128x128xf32>
    %cst_6 = arith.constant dense<0.000000e+00> : vector<128xf32>
    %11 = vector.multi_reduction <add>, %10, %cst_6 [1] : vector<128x128xf32> to vector<128xf32>
    %12 = vector.shape_cast %11 : vector<128xf32> to vector<128x1xf32>
    %13 = math.log %12 : vector<128x1xf32>
    %14 = vector.broadcast %13 : vector<128x1xf32> to vector<128x128xf32>
    %15 = arith.subf %9, %14 : vector<128x128xf32>
    %c0_7 = arith.constant 0 : index
    %c0_8 = arith.constant 0 : index
    %16 = vector.load %arg4[%c0_7, %c0_8] : memref<128x128xf32, #tpu.memory_space<vmem>>, vector<128x128xf32>
    tpu.vector_store %arg4[%c0_7, %c0_8], %15 {strides = array<i32>} : memref<128x128xf32, #tpu.memory_space<vmem>>, vector<128x128xf32>,
    return
  }
  func.func @transform_0(%arg0: i32) -> (i32, i32) {
    %c0_i32 = arith.constant 0 : i32
    %c0_i32_0 = arith.constant 0 : i32
    return %arg0, %c0_i32 : i32, i32
  }
  func.func @transform_1(%arg0: i32) -> (i32, i32) {
    %c0_i32 = arith.constant 0 : i32
    %c0_i32_0 = arith.constant 0 : i32
    %c0_i32_1 = arith.constant 0 : i32
    return %c0_i32, %c0_i32_0 : i32, i32
  }
  func.func @transform_2(%arg0: i32) -> (i32, i32) {
    %c0_i32 = arith.constant 0 : i32
    %c0_i32_0 = arith.constant 0 : i32
    %c0_i32_1 = arith.constant 0 : i32
    return %c0_i32, %c0_i32_0 : i32, i32
  }
  func.func @transform_3(%arg0: i32) -> (i32, i32) {
    %c0_i32 = arith.constant 0 : i32
    %c0_i32_0 = arith.constant 0 : i32
    return %arg0, %c0_i32 : i32, i32
  }
}

</mosaic_0001>

<llo_original>
// kernel: tpu_custom_call.1
$region0: #{tpu_custom_call.1}
  #allocation0 [shape = 'u32[]', space=smem, size = 0x4, offset = 0x4, fixed_abs, tag = 'smem constant byte address 0x4 - core index']
  #allocation1 [shape = 'u32[144,128]{1,0:T(1,128)}', space=vmem, size = 0x12000, scoped, tag = 'internal scratch']
  %s0 = inlined_call_operand.hbm [shape: bf16[128,128], index: 0, kind: input, shape index: {}]
  %s1 = inlined_call_operand.hbm [shape: bf16[128,128], index: 1, kind: input, shape index: {}]
  %s2 = inlined_call_operand.vmem [shape: f32[1,128], index: 2, kind: input, shape index: {}]
  %s3 = inlined_call_operand.hbm [shape: f32[128,128], index: 3, kind: output, shape index: {}]
  %s4 = sld [smem:[#allocation0]]
  $region30: #{tpu_custom_call.1} parent=0
    _
  %s6 = ssub.s32 1, %s4
  %s7 = scalar_select 0, %s6, %s4
  $region1: #{tpu_custom_call.1} parent=0
    #allocation2 [shape = 'u8[32768]{0}', space=vmem, size = 0x8000, scoped, tag = 'input window, operand 0, single buffered']
    #allocation3 [shape = 's32[1]{0}', space=sflag, size = 0x4, scoped, tag = 'scoped memory for tpu_custom_call.1']
    #allocation4 [shape = 's32[1]{0}', space=sflag, size = 0x4, scoped, tag = 'scoped memory for tpu_custom_call.1']
    #allocation5 [shape = 'u8[32768]{0}', space=vmem, size = 0x8000, scoped, tag = 'input window, operand 1, single buffered']
    #allocation6 [shape = 's32[1]{0}', space=sflag, size = 0x4, scoped, tag = 'scoped memory for tpu_custom_call.1']
    #allocation7 [shape = 'u8[65536]{0}', space=vmem, size = 0x10000, scoped, tag = 'output window, operand 0, single buffered']
    %8 = vsyncpa [#allocation3], 0
    %9 = vsyncpa [#allocation6], 0
    %10 = vsyncpa [#allocation4], 0
    // Predicated region
    $region2: #{tpu_custom_call.1} parent=1 // pred_check
      _
    $region3: #{tpu_custom_call.1} parent=1 // pred_check_branch
      %12 = sbr.rel (0) target = $region5
    $region4: #{tpu_custom_call.1} parent=1 // pred_region
      %s14 = ssub.s32 1024, 1024
      %15 = vsyncadd [#allocation3], %s14
      %s16 = sshll.u32 [#allocation2], 4
      %s17 = int_to_ptr.vmem [resolvable:$true] %s16
      %22 = dma.hbm_to_vmem [thread:$0]  %s0, 1024, %s17, [#allocation3], 64, 64, 4
    $region5: #{tpu_custom_call.1} parent=1 // pred_fallthru
      _
    // Predicated region
    $region6: #{tpu_custom_call.1} parent=1 // pred_check
      _
    $region7: #{tpu_custom_call.1} parent=1 // pred_check_branch
      %24 = sbr.rel (0) target = $region9
    $region8: #{tpu_custom_call.1} parent=1 // pred_region
      %s26 = ssub.s32 1024, 1024
      %27 = vsyncadd [#allocation6], %s26
      %s28 = sshll.u32 [#allocation5], 4
      %s29 = int_to_ptr.vmem [resolvable:$true] %s28
      %34 = dma.hbm_to_vmem [thread:$0]  %s1, 1024, %s29, [#allocation6], 64, 64, 4
    $region9: #{tpu_custom_call.1} parent=1 // pred_fallthru
      _
    // Predicated region
    $region10: #{tpu_custom_call.1} parent=1 // pred_check
      _
    $region11: #{tpu_custom_call.1} parent=1 // pred_check_branch
      %36 = sbr.rel (0) target = $region13
    $region12: #{tpu_custom_call.1} parent=1 // pred_region
      _
    $region13: #{tpu_custom_call.1} parent=1 // pred_fallthru
      _
    // Predicated region
    $region14: #{tpu_custom_call.1} parent=1 // pred_check
      _
    $region15: #{tpu_custom_call.1} parent=1 // pred_check_branch
      %38 = sbr.rel (0) target = $region17
    $region16: #{tpu_custom_call.1} parent=1 // pred_region
      %39 = dma.done [#allocation3], 1024
    $region17: #{tpu_custom_call.1} parent=1 // pred_fallthru
      _
    // Predicated region
    $region18: #{tpu_custom_call.1} parent=1 // pred_check
      _
    $region19: #{tpu_custom_call.1} parent=1 // pred_check_branch
      %41 = sbr.rel (0) target = $region21
    $region20: #{tpu_custom_call.1} parent=1 // pred_region
      %42 = dma.done [#allocation6], 1024
    $region21: #{tpu_custom_call.1} parent=1 // pred_fallthru
      _
    %v44 = vld [vmem:[#allocation2] sm:$0xf]
    %v45 = vld [vmem:[#allocation2 + $0x4] sm:$0xf]
    %v46 = vld [vmem:[#allocation2 + $0x8] sm:$0xf]
    %v47 = vld [vmem:[#allocation2 + $0xc] sm:$0xf]
    %v48 = vld [vmem:[#allocation2 + $0x10] sm:$0xf]
    %v49 = vld [vmem:[#allocation2 + $0x14] sm:$0xf]
    %v50 = vld [vmem:[#allocation2 + $0x18] sm:$0xf]
    %v51 = vld [vmem:[#allocation2 + $0x1c] sm:$0xf]
    %v52 = vld [vmem:[#allocation2 + $0x20] sm:$0xf]
    %v53 = vld [vmem:[#allocation2 + $0x24] sm:$0xf]
    %v54 = vld [vmem:[#allocation2 + $0x28] sm:$0xf]
    %v55 = vld [vmem:[#allocation2 + $0x2c] sm:$0xf]
    %v56 = vld [vmem:[#allocation2 + $0x30] sm:$0xf]
    %v57 = vld [vmem:[#allocation2 + $0x34] sm:$0xf]
    %v58 = vld [vmem:[#allocation2 + $0x38] sm:$0xf]
    %v59 = vld [vmem:[#allocation2 + $0x3c] sm:$0xf]
    %v60 = vld [vmem:[#allocation5] sm:$0xf]
    %v61 = vld [vmem:[#allocation5 + $0x4] sm:$0xf]
    %v62 = vld [vmem:[#allocation5 + $0x8] sm:$0xf]
    %v63 = vld [vmem:[#allocation5 + $0xc] sm:$0xf]
    %v64 = vld [vmem:[#allocation5 + $0x10] sm:$0xf]
    %v65 = vld [vmem:[#allocation5 + $0x14] sm:$0xf]
    %v66 = vld [vmem:[#allocation5 + $0x18] sm:$0xf]
    %v67 = vld [vmem:[#allocation5 + $0x1c] sm:$0xf]
    %v68 = vld [vmem:[#allocation5 + $0x20] sm:$0xf]
    %v69 = vld [vmem:[#allocation5 + $0x24] sm:$0xf]
    %v70 = vld [vmem:[#allocation5 + $0x28] sm:$0xf]
    %v71 = vld [vmem:[#allocation5 + $0x2c] sm:$0xf]
    %v72 = vld [vmem:[#allocation5 + $0x30] sm:$0xf]
    %v73 = vld [vmem:[#allocation5 + $0x34] sm:$0xf]
    %v74 = vld [vmem:[#allocation5 + $0x38] sm:$0xf]
    %v75 = vld [vmem:[#allocation5 + $0x3c] sm:$0xf]
    %v76 = vld [vmem:[%s2] sm:$0x1]
    %v78 = vlaneseq
    %v79 = vshrl.u32 %v78, 7
    %v80 = vsub.s32 0, %v79
    %v81 = vrot.slane %v76, %v80
    %v99 = vunpack.c.l.b16 %v44
    %v100 = vunpack.c.l.b16 %v45
    %v101 = vunpack.c.l.b16 %v46
    %v102 = vunpack.c.l.b16 %v47
    %v103 = vunpack.c.l.b16 %v48
    %v104 = vunpack.c.l.b16 %v49
    %v105 = vunpack.c.l.b16 %v50
    %v106 = vunpack.c.l.b16 %v51
    %v107 = vunpack.c.l.b16 %v52
    %v108 = vunpack.c.l.b16 %v53
    %v109 = vunpack.c.l.b16 %v54
    %v110 = vunpack.c.l.b16 %v55
    %v111 = vunpack.c.l.b16 %v56
    %v112 = vunpack.c.l.b16 %v57
    %v113 = vunpack.c.l.b16 %v58
    %v114 = vunpack.c.l.b16 %v59
    %v115 = vpack.c.b16 %v100, %v99
    %v116 = vpack.c.b16 %v102, %v101
    %v117 = vpack.c.b16 %v104, %v103
    %v118 = vpack.c.b16 %v106, %v105
    %v119 = vpack.c.b16 %v108, %v107
    %v120 = vpack.c.b16 %v110, %v109
    %v121 = vpack.c.b16 %v112, %v111
    %v122 = vpack.c.b16 %v114, %v113
    %v147 = vunpack.c.l.b16 %v60
    %v148 = vunpack.c.l.b16 %v61
    %v149 = vunpack.c.l.b16 %v62
    %v150 = vunpack.c.l.b16 %v63
    %v151 = vunpack.c.l.b16 %v64
    %v152 = vunpack.c.l.b16 %v65
    %v153 = vunpack.c.l.b16 %v66
    %v154 = vunpack.c.l.b16 %v67
    %v155 = vunpack.c.l.b16 %v68
    %v156 = vunpack.c.l.b16 %v69
    %v157 = vunpack.c.l.b16 %v70
    %v158 = vunpack.c.l.b16 %v71
    %v159 = vunpack.c.l.b16 %v72
    %v160 = vunpack.c.l.b16 %v73
    %v161 = vunpack.c.l.b16 %v74
    %v162 = vunpack.c.l.b16 %v75
    %v163 = vpack.c.b16 %v148, %v147
    %v164 = vpack.c.b16 %v150, %v149
    %v165 = vpack.c.b16 %v152, %v151
    %v166 = vpack.c.b16 %v154, %v153
    %v167 = vpack.c.b16 %v156, %v155
    %v168 = vpack.c.b16 %v158, %v157
    %v169 = vpack.c.b16 %v160, %v159
    %v170 = vpack.c.b16 %v162, %v161
    %179 = vmatprep.subr.bf16.mxu0 0
    %180 = vmatpush1.bf16.msra.mxu0 %v163
    %181 = vmatprep.subr.bf16.mxu0 0
    %182 = vmatpush1.bf16.msra.mxu0 %v164
    %183 = vmatprep.subr.bf16.mxu0 0
    %184 = vmatpush1.bf16.msra.mxu0 %v165
    %185 = vmatprep.subr.bf16.mxu0 0
    %186 = vmatpush1.bf16.msra.mxu0 %v166
    %187 = vmatprep.subr.bf16.mxu0 0
    %188 = vmatpush1.bf16.msra.mxu0 %v167
    %189 = vmatprep.subr.bf16.mxu0 0
    %190 = vmatpush1.bf16.msra.mxu0 %v168
    %191 = vmatprep.subr.bf16.mxu0 0
    %192 = vmatpush1.bf16.msra.mxu0 %v169
    %193 = vmatprep.subr.bf16.mxu0 0
    %194 = vmatpush1.bf16.msra.mxu0 %v170
    %195 = vmatprep.subr.bf16.mxu0 0
    %196 = vmatpush1.bf16.msra.mxu0 0
    %197 = vmatprep.subr.bf16.mxu0 0
    %198 = vmatpush1.bf16.msra.mxu0 0
    %199 = vmatprep.subr.bf16.mxu0 0
    %200 = vmatpush1.bf16.msra.mxu0 0
    %201 = vmatprep.subr.bf16.mxu0 0
    %202 = vmatpush1.bf16.msra.mxu0 0
    %203 = vmatprep.subr.bf16.mxu0 0
    %204 = vmatpush1.bf16.msra.mxu0 0
    %205 = vmatprep.subr.bf16.mxu0 0
    %206 = vmatpush1.bf16.msra.mxu0 0
    %207 = vmatprep.subr.bf16.mxu0 0
    %208 = vmatpush1.bf16.msra.mxu0 0
    %209 = vmatprep.subr.bf16.mxu0 0
    %210 = vmatpush1.bf16.msra.mxu0 0
    %211 = vmatprep.mubr.bf16.mxu0 0
    %212 = vmatmul.mubr.bf16.gmra.mrb[0].mxu0 %v115
    %v213 = vpop.f32.mrb[0].mxu0
    %v214 = vadd.f32 %v81, %v213
    %v215 = vpop.f32.mrb[0].mxu0
    %v216 = vpop.f32.mrb[0].mxu0
    %v217 = vadd.f32 %v81, %v216
    %v218 = vpop.f32.mrb[0].mxu0
    %219 = vmatprep.mubr.bf16.mxu0 0
    %220 = vmatmul.mubr.bf16.gmra.mrb[0].mxu0 %v116
    %v221 = vpop.f32.mrb[0].mxu0
    %v222 = vadd.f32 %v81, %v221
    %v223 = vpop.f32.mrb[0].mxu0
    %v224 = vpop.f32.mrb[0].mxu0
    %v225 = vadd.f32 %v81, %v224
    %v226 = vpop.f32.mrb[0].mxu0
    %227 = vmatprep.mubr.bf16.mxu0 0
    %228 = vmatmul.mubr.bf16.gmra.mrb[0].mxu0 %v117
    %v229 = vpop.f32.mrb[0].mxu0
    %v230 = vadd.f32 %v81, %v229
    %v231 = vpop.f32.mrb[0].mxu0
    %v232 = vpop.f32.mrb[0].mxu0
    %v233 = vadd.f32 %v81, %v232
    %v234 = vpop.f32.mrb[0].mxu0
    %235 = vmatprep.mubr.bf16.mxu0 0
    %236 = vmatmul.mubr.bf16.gmra.mrb[0].mxu0 %v118
    %v237 = vpop.f32.mrb[0].mxu0
    %v238 = vadd.f32 %v81, %v237
    %v239 = vpop.f32.mrb[0].mxu0
    %v240 = vpop.f32.mrb[0].mxu0
    %v241 = vadd.f32 %v81, %v240
    %v242 = vpop.f32.mrb[0].mxu0
    %243 = vmatprep.mubr.bf16.mxu0 0
    %244 = vmatmul.mubr.bf16.gmra.mrb[0].mxu0 %v119
    %v245 = vpop.f32.mrb[0].mxu0
    %v246 = vadd.f32 %v81, %v245
    %v247 = vpop.f32.mrb[0].mxu0
    %v248 = vpop.f32.mrb[0].mxu0
    %v249 = vadd.f32 %v81, %v248
    %v250 = vpop.f32.mrb[0].mxu0
    %251 = vmatprep.mubr.bf16.mxu0 0
    %252 = vmatmul.mubr.bf16.gmra.mrb[0].mxu0 %v120
    %v253 = vpop.f32.mrb[0].mxu0
    %v254 = vadd.f32 %v81, %v253
    %v255 = vpop.f32.mrb[0].mxu0
    %v256 = vpop.f32.mrb[0].mxu0
    %v257 = vadd.f32 %v81, %v256
    %v258 = vpop.f32.mrb[0].mxu0
    %259 = vmatprep.mubr.bf16.mxu0 0
    %260 = vmatmul.mubr.bf16.gmra.mrb[0].mxu0 %v121
    %v261 = vpop.f32.mrb[0].mxu0
    %v262 = vadd.f32 %v81, %v261
    %v263 = vpop.f32.mrb[0].mxu0
    %v264 = vpop.f32.mrb[0].mxu0
    %v265 = vadd.f32 %v81, %v264
    %v266 = vpop.f32.mrb[0].mxu0
    %267 = vmatprep.mubr.bf16.mxu0 0
    %268 = vmatmul.mubr.bf16.gmra.mrb[0].mxu0 %v122
    %v269 = vpop.f32.mrb[0].mxu0
    %v270 = vadd.f32 %v81, %v269
    %v271 = vpop.f32.mrb[0].mxu0
    %v272 = vpop.f32.mrb[0].mxu0
    %v273 = vadd.f32 %v81, %v272
    %v274 = vpop.f32.mrb[0].mxu0
    %275 = vdwg.mxu0
    %276 = vmax.xlane.f32.xlu0 %v214
    %v277 = vpop.xlane.xlu0 %276
    %278 = vmax.xlane.f32.xlu0 %v217
    %v279 = vpop.xlane.xlu0 %278
    %280 = vmax.xlane.f32.xlu0 %v222
    %v281 = vpop.xlane.xlu0 %280
    %282 = vmax.xlane.f32.xlu0 %v225
    %v283 = vpop.xlane.xlu0 %282
    %284 = vmax.xlane.f32.xlu0 %v230
    %v285 = vpop.xlane.xlu0 %284
    %286 = vmax.xlane.f32.xlu0 %v233
    %v287 = vpop.xlane.xlu0 %286
    %288 = vmax.xlane.f32.xlu0 %v238
    %v289 = vpop.xlane.xlu0 %288
    %290 = vmax.xlane.f32.xlu0 %v241
    %v291 = vpop.xlane.xlu0 %290
    %292 = vmax.xlane.f32.xlu0 %v246
    %v293 = vpop.xlane.xlu0 %292
    %294 = vmax.xlane.f32.xlu0 %v249
    %v295 = vpop.xlane.xlu0 %294
    %296 = vmax.xlane.f32.xlu0 %v254
    %v297 = vpop.xlane.xlu0 %296
    %298 = vmax.xlane.f32.xlu0 %v257
    %v299 = vpop.xlane.xlu0 %298
    %300 = vmax.xlane.f32.xlu0 %v262
    %v301 = vpop.xlane.xlu0 %300
    %302 = vmax.xlane.f32.xlu0 %v265
    %v303 = vpop.xlane.xlu0 %302
    %304 = vmax.xlane.f32.xlu0 %v270
    %v305 = vpop.xlane.xlu0 %304
    %306 = vmax.xlane.f32.xlu0 %v273
    %v307 = vpop.xlane.xlu0 %306
    %v308 = vsub.f32 %v214, %v277
    %v309 = vsub.f32 %v217, %v279
    %v310 = vsub.f32 %v222, %v281
    %v311 = vsub.f32 %v225, %v283
    %v312 = vsub.f32 %v230, %v285
    %v313 = vsub.f32 %v233, %v287
    %v314 = vsub.f32 %v238, %v289
    %v315 = vsub.f32 %v241, %v291
    %v316 = vsub.f32 %v246, %v293
    %v317 = vsub.f32 %v249, %v295
    %v318 = vsub.f32 %v254, %v297
    %v319 = vsub.f32 %v257, %v299
    %v320 = vsub.f32 %v262, %v301
    %v321 = vsub.f32 %v265, %v303
    %v322 = vsub.f32 %v270, %v305
    %v323 = vsub.f32 %v273, %v307
    %v324 = vmul.f32 %v308, 1.442695
    %v325 = vpow.pop %v324
    %v326 = vmul.f32 %v309, 1.442695
    %v327 = vpow.pop %v326
    %v328 = vmul.f32 %v310, 1.442695
    %v329 = vpow.pop %v328
    %v330 = vmul.f32 %v311, 1.442695
    %v331 = vpow.pop %v330
    %v332 = vmul.f32 %v312, 1.442695
    %v333 = vpow.pop %v332
    %v334 = vmul.f32 %v313, 1.442695
    %v335 = vpow.pop %v334
    %v336 = vmul.f32 %v314, 1.442695
    %v337 = vpow.pop %v336
    %v338 = vmul.f32 %v315, 1.442695
    %v339 = vpow.pop %v338
    %v340 = vmul.f32 %v316, 1.442695
    %v341 = vpow.pop %v340
    %v342 = vmul.f32 %v317, 1.442695
    %v343 = vpow.pop %v342
    %v344 = vmul.f32 %v318, 1.442695
    %v345 = vpow.pop %v344
    %v346 = vmul.f32 %v319, 1.442695
    %v347 = vpow.pop %v346
    %v348 = vmul.f32 %v320, 1.442695
    %v349 = vpow.pop %v348
    %v350 = vmul.f32 %v321, 1.442695
    %v351 = vpow.pop %v350
    %v352 = vmul.f32 %v322, 1.442695
    %v353 = vpow.pop %v352
    %v354 = vmul.f32 %v323, 1.442695
    %v355 = vpow.pop %v354
    %356 = vadd.xlane.f32.xlu0 %v325
    %v357 = vpop.xlane.xlu0 %356
    %358 = vadd.xlane.f32.xlu0 %v327
    %v359 = vpop.xlane.xlu0 %358
    %360 = vadd.xlane.f32.xlu0 %v329
    %v361 = vpop.xlane.xlu0 %360
    %362 = vadd.xlane.f32.xlu0 %v331
    %v363 = vpop.xlane.xlu0 %362
    %364 = vadd.xlane.f32.xlu0 %v333
    %v365 = vpop.xlane.xlu0 %364
    %366 = vadd.xlane.f32.xlu0 %v335
    %v367 = vpop.xlane.xlu0 %366
    %368 = vadd.xlane.f32.xlu0 %v337
    %v369 = vpop.xlane.xlu0 %368
    %370 = vadd.xlane.f32.xlu0 %v339
    %v371 = vpop.xlane.xlu0 %370
    %372 = vadd.xlane.f32.xlu0 %v341
    %v373 = vpop.xlane.xlu0 %372
    %374 = vadd.xlane.f32.xlu0 %v343
    %v375 = vpop.xlane.xlu0 %374
    %376 = vadd.xlane.f32.xlu0 %v345
    %v377 = vpop.xlane.xlu0 %376
    %378 = vadd.xlane.f32.xlu0 %v347
    %v379 = vpop.xlane.xlu0 %378
    %380 = vadd.xlane.f32.xlu0 %v349
    %v381 = vpop.xlane.xlu0 %380
    %382 = vadd.xlane.f32.xlu0 %v351
    %v383 = vpop.xlane.xlu0 %382
    %384 = vadd.xlane.f32.xlu0 %v353
    %v385 = vpop.xlane.xlu0 %384
    %386 = vadd.xlane.f32.xlu0 %v355
    %v387 = vpop.xlane.xlu0 %386
    %v388 = vlog2.pop %v357
    %v389 = vmul.f32 %v388, 0.6931472
    %v390 = vlog2.pop %v359
    %v391 = vmul.f32 %v390, 0.6931472
    %v392 = vlog2.pop %v361
    %v393 = vmul.f32 %v392, 0.6931472
    %v394 = vlog2.pop %v363
    %v395 = vmul.f32 %v394, 0.6931472
    %v396 = vlog2.pop %v365
    %v397 = vmul.f32 %v396, 0.6931472
    %v398 = vlog2.pop %v367
    %v399 = vmul.f32 %v398, 0.6931472
    %v400 = vlog2.pop %v369
    %v401 = vmul.f32 %v400, 0.6931472
    %v402 = vlog2.pop %v371
    %v403 = vmul.f32 %v402, 0.6931472
    %v404 = vlog2.pop %v373
    %v405 = vmul.f32 %v404, 0.6931472
    %v406 = vlog2.pop %v375
    %v407 = vmul.f32 %v406, 0.6931472
    %v408 = vlog2.pop %v377
    %v409 = vmul.f32 %v408, 0.6931472
    %v410 = vlog2.pop %v379
    %v411 = vmul.f32 %v410, 0.6931472
    %v412 = vlog2.pop %v381
    %v413 = vmul.f32 %v412, 0.6931472
    %v414 = vlog2.pop %v383
    %v415 = vmul.f32 %v414, 0.6931472
    %v416 = vlog2.pop %v385
    %v417 = vmul.f32 %v416, 0.6931472
    %v418 = vlog2.pop %v387
    %v419 = vmul.f32 %v418, 0.6931472
    %v420 = vsub.f32 %v308, %v389
    %v421 = vsub.f32 %v309, %v391
    %v422 = vsub.f32 %v310, %v393
    %v423 = vsub.f32 %v311, %v395
    %v424 = vsub.f32 %v312, %v397
    %v425 = vsub.f32 %v313, %v399
    %v426 = vsub.f32 %v314, %v401
    %v427 = vsub.f32 %v315, %v403
    %v428 = vsub.f32 %v316, %v405
    %v429 = vsub.f32 %v317, %v407
    %v430 = vsub.f32 %v318, %v409
    %v431 = vsub.f32 %v319, %v411
    %v432 = vsub.f32 %v320, %v413
    %v433 = vsub.f32 %v321, %v415
    %v434 = vsub.f32 %v322, %v417
    %v435 = vsub.f32 %v323, %v419
    %436 = vst [vmem:[#allocation7] sm:$0xff] %v420
    %437 = vst [vmem:[#allocation7 + $0x8] sm:$0xff] %v421
    %438 = vst [vmem:[#allocation7 + $0x10] sm:$0xff] %v422
    %439 = vst [vmem:[#allocation7 + $0x18] sm:$0xff] %v423
    %440 = vst [vmem:[#allocation7 + $0x20] sm:$0xff] %v424
    %441 = vst [vmem:[#allocation7 + $0x28] sm:$0xff] %v425
    %442 = vst [vmem:[#allocation7 + $0x30] sm:$0xff] %v426
    %443 = vst [vmem:[#allocation7 + $0x38] sm:$0xff] %v427
    %444 = vst [vmem:[#allocation7 + $0x40] sm:$0xff] %v428
    %445 = vst [vmem:[#allocation7 + $0x48] sm:$0xff] %v429
    %446 = vst [vmem:[#allocation7 + $0x50] sm:$0xff] %v430
    %447 = vst [vmem:[#allocation7 + $0x58] sm:$0xff] %v431
    %448 = vst [vmem:[#allocation7 + $0x60] sm:$0xff] %v432
    %449 = vst [vmem:[#allocation7 + $0x68] sm:$0xff] %v433
    %450 = vst [vmem:[#allocation7 + $0x70] sm:$0xff] %v434
    %451 = vst [vmem:[#allocation7 + $0x78] sm:$0xff] %v435
    // Predicated region
    $region22: #{tpu_custom_call.1} parent=1 // pred_check
      _
    $region23: #{tpu_custom_call.1} parent=1 // pred_check_branch
      %453 = sbr.rel (0) target = $region25
    $region24: #{tpu_custom_call.1} parent=1 // pred_region
      %s455 = ssub.s32 2048, 2048
      %456 = vsyncadd [#allocation4], %s455
      %s457 = sshll.u32 [#allocation7], 4
      %s458 = int_to_ptr.vmem [resolvable:$true] %s457
      %463 = dma.vmem_to_hbm [thread:$0]  %s458, 2048, %s3, [#allocation4], 128, 128, 8
    $region25: #{tpu_custom_call.1} parent=1 // pred_fallthru
      _
    // Predicated region
    $region26: #{tpu_custom_call.1} parent=1 // pred_check
      _
    $region27: #{tpu_custom_call.1} parent=1 // pred_check_branch
      %465 = sbr.rel (0) target = $region29
    $region28: #{tpu_custom_call.1} parent=1 // pred_region
      %466 = dma.done [#allocation4], 2048
    $region29: #{tpu_custom_call.1} parent=1 // pred_fallthru
      _
    %467 = vsyncpa [#allocation3], 1
    %468 = vsyncpa [#allocation6], 1
    %469 = vsyncpa [#allocation4], 1

</llo_original>
